<compile_context>
chip_gen: v5e
topology: v5e:2x2
jax: 0.10.0
libtpu: 0.0.40
codegen_flags: <defaults>
</compile_context>

<pallas_src>
import jax
import jax.numpy as jnp
from jax.experimental import pallas as pl
from jax.experimental.pallas import tpu as pltpu


HIDDEN = 8            # number_neurons_hidden_layer
N_HIDDEN_LAYERS = 3   # num_hidden_layers


def mlp_kernel(x_ref,
               w0_ref, b0_ref,
               w1_ref, b1_ref,
               w2_ref, b2_ref,
               w3_ref, b3_ref,
               w4_ref, b4_ref,
               o_ref):
    # Layer 0 in the natural (rows, features) layout:
    #   (TB, n_in) @ (n_in, 8) -> (TB, 8), f32 accumulation.
    x = x_ref[...].astype(jnp.float32)
    h = jnp.dot(x, w0_ref[...], preferred_element_type=jnp.float32)
    h = jnp.maximum(h + b0_ref[...], 0.0)                      # (TB, 8)

    # Flip once so the (large) batch-tile dim sits on the lane axis from here
    # on; every later op and the final store are lane-dense.
    ht = h.T                                                   # (8, TB)

    # Hidden layers: weights stored PyTorch-native (out, in) -> h' = W @ h.
    for w_ref, b_ref in ((w1_ref, b1_ref), (w2_ref, b2_ref), (w3_ref, b3_ref)):
        ht = jnp.dot(w_ref[...], ht, preferred_element_type=jnp.float32)
        ht = jnp.maximum(ht + b_ref[...], 0.0)                 # (8, TB)

    # Output layer + final ReLU (matches the module).
    ot = jnp.dot(w4_ref[...], ht, preferred_element_type=jnp.float32)
    o_ref[...] = jnp.maximum(ot + b4_ref[...], 0.0).astype(o_ref.dtype)  # (n_out, TB)


def _pick_batch_tile(batch, n_in, n_out, in_bytes, out_bytes,
                     vmem_budget_bytes=8 << 20):
    """VMEM-aware batch tile.

    Double-buffered input + output tiles stay under a conservative budget
    (safe for v7x's 64 MiB VMEM / 32 MiB default scoped limit).  The tile is a
    multiple of 128 (it is the lane axis of the transposed output block)
    unless it equals the whole batch, satisfying the (8, 128) BlockSpec rule.
    """
    if batch <= 256:
        return batch                      # single block; dims equal full array
    per_row = 2 * (n_in * in_bytes + n_out * out_bytes)   # 2x = double buffering
    tb = vmem_budget_bytes // max(per_row, 1)
    tb = max(128, min(2048, (tb // 128) * 128))
    return batch if tb >= batch else tb


def mynet_forward(x, params, *, batch_tile=None):
    """x: any shape whose total size is divisible by n_in. Returns (B, n_out) f32."""
    (w0, b0), hh, (w4, b4) = params
    n_in = w0.shape[0]
    n_out = w4.shape[0]

    # Glue: x.view(-1, n_in).  Stream activations in bf16 (memory-bound).
    x2 = x.reshape(-1, n_in)
    if x2.dtype != jnp.bfloat16:
        x2 = x2.astype(jnp.bfloat16)
    batch = x2.shape[0]

    tb = batch_tile if batch_tile is not None else _pick_batch_tile(
        batch, n_in, n_out, x2.dtype.itemsize, 4)
    grid = (pl.cdiv(batch, tb),)

    flat_args = [x2, w0, b0]
    for (w, b) in hh:
        flat_args += [w, b]
    flat_args += [w4, b4]

    def resident(a):
        # Whole-array VMEM block, constant block index -> fetched once,
        # never re-DMA'd across batch tiles.
        return pl.BlockSpec(a.shape, lambda i: (0,) * a.ndim)

    in_specs = [pl.BlockSpec((tb, n_in), lambda i: (i, 0))]
    in_specs += [resident(a) for a in flat_args[1:]]
    out_specs = pl.BlockSpec((n_out, tb), lambda i: (0, i))

    flops = 2 * batch * (n_in * HIDDEN
                         + N_HIDDEN_LAYERS * HIDDEN * HIDDEN
                         + HIDDEN * n_out)
    param_bytes = sum(int(a.size) * a.dtype.itemsize for a in flat_args[1:])
    bytes_accessed = batch * (n_in * x2.dtype.itemsize + n_out * 4) + param_bytes

    out_t = pl.pallas_call(
        mlp_kernel,
        out_shape=jax.ShapeDtypeStruct((n_out, batch), jnp.float32),
        grid=grid,
        in_specs=in_specs,
        out_specs=out_specs,
        compiler_params=pltpu.CompilerParams(
            dimension_semantics=("parallel",)),
        cost_estimate=pl.CostEstimate(
            flops=flops, transcendentals=0, bytes_accessed=bytes_accessed),
    )(*flat_args)

    # Lane-dense (n_out, B) slab back to the module's (B, n_out) layout
    # (tiny transpose: B * n_out elements).
    return out_t.T


def init_params(key, n_in, n_out):
    """Deterministic parameter init (shapes/init match MyNet.__init__)."""
    keys = jax.random.split(key, 2 * (2 + N_HIDDEN_LAYERS))
    ki = iter(keys)

    def uniform(shape, fan_in):
        bound = 1.0 / (fan_in ** 0.5)
        return jax.random.uniform(next(ki), shape, jnp.float32, -bound, bound)

    # Layer 0 stored as (in, out) + (1, out): natural (rows, features) matmul.
    w0 = uniform((n_in, HIDDEN), n_in)
    b0 = uniform((1, HIDDEN), n_in)
    # Hidden/output layers stored PyTorch-native (out, in) with (out, 1)
    # biases: the kernel works in the transposed (features, batch) layout.
    hh = tuple((uniform((HIDDEN, HIDDEN), HIDDEN), uniform((HIDDEN, 1), HIDDEN))
               for _ in range(N_HIDDEN_LAYERS))
    w4 = uniform((n_out, HIDDEN), HIDDEN)
    b4 = uniform((n_out, 1), HIDDEN)
    return (w0, b0), hh, (w4, b4)


if __name__ == "__main__":
    n_in, hid, n_out = 16, 32, 4   # `hid` stored by the module but unused in forward
    batch = 512

    key = jax.random.PRNGKey(0)
    k_x, k_p = jax.random.split(key)

    # bf16 input: the kernel streams activations in bf16.
    x = jax.random.normal(k_x, (batch, n_in), jnp.bfloat16)
    params = init_params(k_p, n_in, n_out)

    # batch_tile=128 forces a real multi-step pipelined grid (4 tiles) with
    # 128-lane-dense output stores even at this small demo batch.
    out = mynet_forward(x, params, batch_tile=128)
    jax.block_until_ready(out)

    # Pure-JAX reference of the same math (same bf16-quantized input).
    (w0, b0), hh, (w4, b4) = params
    xf = x.reshape(-1, n_in).astype(jnp.float32)
    ref = jnp.maximum(xf @ w0 + b0, 0.0)
    for (w, b) in hh:
        ref = jnp.maximum(ref @ w.T + b.T, 0.0)
    ref = jnp.maximum(ref @ w4.T + b4.T, 0.0)

    assert out.shape == (batch, n_out)
    assert jnp.allclose(out, ref, atol=2e-2, rtol=2e-2), "mismatch vs reference"

    print("KERNEL_OK")
</pallas_src>

<mosaic_0001>
module attributes {stable_mosaic.version = 11 : i64} {
  func.func @mlp_kernel(%arg0: i32, %arg1: memref<128x16xbf16, #tpu.memory_space<vmem>>, %arg2: memref<16x8xf32, #tpu.memory_space<vmem>>, %arg3: memref<1x8xf32, #tpu.memory_space<vmem>>, %arg4: memref<8x8xf32, #tpu.memory_space<vmem>>, %arg5: memref<8x1xf32, #tpu.memory_space<vmem>>, %arg6: memref<8x8xf32, #tpu.memory_space<vmem>>, %arg7: memref<8x1xf32, #tpu.memory_space<vmem>>, %arg8: memref<8x8xf32, #tpu.memory_space<vmem>>, %arg9: memref<8x1xf32, #tpu.memory_space<vmem>>, %arg10: memref<4x8xf32, #tpu.memory_space<vmem>>, %arg11: memref<4x1xf32, #tpu.memory_space<vmem>>, %arg12: memref<4x128xf32, #tpu.memory_space<vmem>>) attributes {dimension_semantics = [#tpu.dimension_semantics<parallel>], iteration_bounds = array<i64: 4>, scalar_prefetch = 0 : i64, scratch_operands = 0 : i64, tpu.core_type = #tpu.core_type<tc>, window_params = [{transform_indices = @transform_0, window_bounds = array<i64: 128, 16>}, {pipeline_mode = #tpu.pipeline_mode<synchronous>, transform_indices = @transform_1, window_bounds = array<i64: 16, 8>}, {pipeline_mode = #tpu.pipeline_mode<synchronous>, transform_indices = @transform_2, window_bounds = array<i64: 1, 8>}, {pipeline_mode = #tpu.pipeline_mode<synchronous>, transform_indices = @transform_3, window_bounds = array<i64: 8, 8>}, {pipeline_mode = #tpu.pipeline_mode<synchronous>, transform_indices = @transform_4, window_bounds = array<i64: 8, 1>}, {pipeline_mode = #tpu.pipeline_mode<synchronous>, transform_indices = @transform_5, window_bounds = array<i64: 8, 8>}, {pipeline_mode = #tpu.pipeline_mode<synchronous>, transform_indices = @transform_6, window_bounds = array<i64: 8, 1>}, {pipeline_mode = #tpu.pipeline_mode<synchronous>, transform_indices = @transform_7, window_bounds = array<i64: 8, 8>}, {pipeline_mode = #tpu.pipeline_mode<synchronous>, transform_indices = @transform_8, window_bounds = array<i64: 8, 1>}, {pipeline_mode = #tpu.pipeline_mode<synchronous>, transform_indices = @transform_9, window_bounds = array<i64: 4, 8>}, {pipeline_mode = #tpu.pipeline_mode<synchronous>, transform_indices = @transform_10, window_bounds = array<i64: 4, 1>}, {transform_indices = @transform_11, window_bounds = array<i64: 4, 128>}]} {
    %c0 = arith.constant 0 : index
    %c0_0 = arith.constant 0 : index
    %0 = vector.load %arg1[%c0, %c0_0] : memref<128x16xbf16, #tpu.memory_space<vmem>>, vector<128x16xbf16>
    %1 = arith.extf %0 : vector<128x16xbf16> to vector<128x16xf32>
    %c0_1 = arith.constant 0 : index
    %c0_2 = arith.constant 0 : index
    %2 = vector.load %arg2[%c0_1, %c0_2] : memref<16x8xf32, #tpu.memory_space<vmem>>, vector<16x8xf32>
    %cst = arith.constant dense<0.000000e+00> : vector<128x8xf32>
    %3 = tpu.matmul %1, %2, %cst {dimension_numbers = #tpu.dot_dimension_numbers<[1], [0], [0], [1], [0, 0, 1, 1], [], []>} : vector<128x16xf32>, vector<16x8xf32>, vector<128x8xf32> -> vector<128x8xf32>
    %c0_3 = arith.constant 0 : index
    %c0_4 = arith.constant 0 : index
    %4 = vector.load %arg3[%c0_3, %c0_4] : memref<1x8xf32, #tpu.memory_space<vmem>>, vector<1x8xf32>
    %5 = vector.broadcast %4 : vector<1x8xf32> to vector<128x8xf32>
    %6 = arith.addf %3, %5 : vector<128x8xf32>
    %cst_5 = arith.constant 0.000000e+00 : f32
    %7 = vector.broadcast %cst_5 : f32 to vector<128x8xf32>
    %8 = arith.maximumf %6, %7 : vector<128x8xf32>
    %9 = tpu.transpose %8, [1, 0] : vector<128x8xf32> -> vector<8x128xf32>
    %c0_6 = arith.constant 0 : index
    %c0_7 = arith.constant 0 : index
    %10 = vector.load %arg4[%c0_6, %c0_7] : memref<8x8xf32, #tpu.memory_space<vmem>>, vector<8x8xf32>
    %cst_8 = arith.constant dense<0.000000e+00> : vector<8x128xf32>
    %11 = tpu.matmul %10, %9, %cst_8 {dimension_numbers = #tpu.dot_dimension_numbers<[1], [0], [0], [1], [0, 0, 1, 1], [], []>} : vector<8x8xf32>, vector<8x128xf32>, vector<8x128xf32> -> vector<8x128xf32>
    %c0_9 = arith.constant 0 : index
    %c0_10 = arith.constant 0 : index
    %12 = vector.load %arg5[%c0_9, %c0_10] : memref<8x1xf32, #tpu.memory_space<vmem>>, vector<8x1xf32>
    %13 = vector.broadcast %12 : vector<8x1xf32> to vector<8x128xf32>
    %14 = arith.addf %11, %13 : vector<8x128xf32>
    %cst_11 = arith.constant 0.000000e+00 : f32
    %15 = vector.broadcast %cst_11 : f32 to vector<8x128xf32>
    %16 = arith.maximumf %14, %15 : vector<8x128xf32>
    %c0_12 = arith.constant 0 : index
    %c0_13 = arith.constant 0 : index
    %17 = vector.load %arg6[%c0_12, %c0_13] : memref<8x8xf32, #tpu.memory_space<vmem>>, vector<8x8xf32>
    %cst_14 = arith.constant dense<0.000000e+00> : vector<8x128xf32>
    %18 = tpu.matmul %17, %16, %cst_14 {dimension_numbers = #tpu.dot_dimension_numbers<[1], [0], [0], [1], [0, 0, 1, 1], [], []>} : vector<8x8xf32>, vector<8x128xf32>, vector<8x128xf32> -> vector<8x128xf32>
    %c0_15 = arith.constant 0 : index
    %c0_16 = arith.constant 0 : index
    %19 = vector.load %arg7[%c0_15, %c0_16] : memref<8x1xf32, #tpu.memory_space<vmem>>, vector<8x1xf32>
    %20 = vector.broadcast %19 : vector<8x1xf32> to vector<8x128xf32>
    %21 = arith.addf %18, %20 : vector<8x128xf32>
    %cst_17 = arith.constant 0.000000e+00 : f32
    %22 = vector.broadcast %cst_17 : f32 to vector<8x128xf32>
    %23 = arith.maximumf %21, %22 : vector<8x128xf32>
    %c0_18 = arith.constant 0 : index
    %c0_19 = arith.constant 0 : index
    %24 = vector.load %arg8[%c0_18, %c0_19] : memref<8x8xf32, #tpu.memory_space<vmem>>, vector<8x8xf32>
    %cst_20 = arith.constant dense<0.000000e+00> : vector<8x128xf32>
    %25 = tpu.matmul %24, %23, %cst_20 {dimension_numbers = #tpu.dot_dimension_numbers<[1], [0], [0], [1], [0, 0, 1, 1], [], []>} : vector<8x8xf32>, vector<8x128xf32>, vector<8x128xf32> -> vector<8x128xf32>
    %c0_21 = arith.constant 0 : index
    %c0_22 = arith.constant 0 : index
    %26 = vector.load %arg9[%c0_21, %c0_22] : memref<8x1xf32, #tpu.memory_space<vmem>>, vector<8x1xf32>
    %27 = vector.broadcast %26 : vector<8x1xf32> to vector<8x128xf32>
    %28 = arith.addf %25, %27 : vector<8x128xf32>
    %cst_23 = arith.constant 0.000000e+00 : f32
    %29 = vector.broadcast %cst_23 : f32 to vector<8x128xf32>
    %30 = arith.maximumf %28, %29 : vector<8x128xf32>
    %c0_24 = arith.constant 0 : index
    %c0_25 = arith.constant 0 : index
    %31 = vector.load %arg10[%c0_24, %c0_25] : memref<4x8xf32, #tpu.memory_space<vmem>>, vector<4x8xf32>
    %cst_26 = arith.constant dense<0.000000e+00> : vector<4x128xf32>
    %32 = tpu.matmul %31, %30, %cst_26 {dimension_numbers = #tpu.dot_dimension_numbers<[1], [0], [0], [1], [0, 0, 1, 1], [], []>} : vector<4x8xf32>, vector<8x128xf32>, vector<4x128xf32> -> vector<4x128xf32>
    %c0_27 = arith.constant 0 : index
    %c0_28 = arith.constant 0 : index
    %33 = vector.load %arg11[%c0_27, %c0_28] : memref<4x1xf32, #tpu.memory_space<vmem>>, vector<4x1xf32>
    %34 = vector.broadcast %33 : vector<4x1xf32> to vector<4x128xf32>
    %35 = arith.addf %32, %34 : vector<4x128xf32>
    %cst_29 = arith.constant 0.000000e+00 : f32
    %36 = vector.broadcast %cst_29 : f32 to vector<4x128xf32>
    %37 = arith.maximumf %35, %36 : vector<4x128xf32>
    %c0_30 = arith.constant 0 : index
    %c0_31 = arith.constant 0 : index
    %38 = vector.load %arg12[%c0_30, %c0_31] : memref<4x128xf32, #tpu.memory_space<vmem>>, vector<4x128xf32>
    tpu.vector_store %arg12[%c0_30, %c0_31], %37 {strides = array<i32>} : memref<4x128xf32, #tpu.memory_space<vmem>>, vector<4x128xf32>,
    return
  }
  func.func @transform_0(%arg0: i32) -> (i32, i32) {
    %c0_i32 = arith.constant 0 : i32
    %c0_i32_0 = arith.constant 0 : i32
    return %arg0, %c0_i32 : i32, i32
  }
  func.func @transform_1(%arg0: i32) -> (i32, i32) {
    %c0_i32 = arith.constant 0 : i32
    %c0_i32_0 = arith.constant 0 : i32
    %c0_i32_1 = arith.constant 0 : i32
    return %c0_i32, %c0_i32_0 : i32, i32
  }
  func.func @transform_2(%arg0: i32) -> (i32, i32) {
    %c0_i32 = arith.constant 0 : i32
    %c0_i32_0 = arith.constant 0 : i32
    %c0_i32_1 = arith.constant 0 : i32
    return %c0_i32, %c0_i32_0 : i32, i32
  }
  func.func @transform_3(%arg0: i32) -> (i32, i32) {
    %c0_i32 = arith.constant 0 : i32
    %c0_i32_0 = arith.constant 0 : i32
    %c0_i32_1 = arith.constant 0 : i32
    return %c0_i32, %c0_i32_0 : i32, i32
  }
  func.func @transform_4(%arg0: i32) -> (i32, i32) {
    %c0_i32 = arith.constant 0 : i32
    %c0_i32_0 = arith.constant 0 : i32
    %c0_i32_1 = arith.constant 0 : i32
    return %c0_i32, %c0_i32_0 : i32, i32
  }
  func.func @transform_5(%arg0: i32) -> (i32, i32) {
    %c0_i32 = arith.constant 0 : i32
    %c0_i32_0 = arith.constant 0 : i32
    %c0_i32_1 = arith.constant 0 : i32
    return %c0_i32, %c0_i32_0 : i32, i32
  }
  func.func @transform_6(%arg0: i32) -> (i32, i32) {
    %c0_i32 = arith.constant 0 : i32
    %c0_i32_0 = arith.constant 0 : i32
    %c0_i32_1 = arith.constant 0 : i32
    return %c0_i32, %c0_i32_0 : i32, i32
  }
  func.func @transform_7(%arg0: i32) -> (i32, i32) {
    %c0_i32 = arith.constant 0 : i32
    %c0_i32_0 = arith.constant 0 : i32
    %c0_i32_1 = arith.constant 0 : i32
    return %c0_i32, %c0_i32_0 : i32, i32
  }
  func.func @transform_8(%arg0: i32) -> (i32, i32) {
    %c0_i32 = arith.constant 0 : i32
    %c0_i32_0 = arith.constant 0 : i32
    %c0_i32_1 = arith.constant 0 : i32
    return %c0_i32, %c0_i32_0 : i32, i32
  }
  func.func @transform_9(%arg0: i32) -> (i32, i32) {
    %c0_i32 = arith.constant 0 : i32
    %c0_i32_0 = arith.constant 0 : i32
    %c0_i32_1 = arith.constant 0 : i32
    return %c0_i32, %c0_i32_0 : i32, i32
  }
  func.func @transform_10(%arg0: i32) -> (i32, i32) {
    %c0_i32 = arith.constant 0 : i32
    %c0_i32_0 = arith.constant 0 : i32
    %c0_i32_1 = arith.constant 0 : i32
    return %c0_i32, %c0_i32_0 : i32, i32
  }
  func.func @transform_11(%arg0: i32) -> (i32, i32) {
    %c0_i32 = arith.constant 0 : i32
    %c0_i32_0 = arith.constant 0 : i32
    return %c0_i32, %arg0 : i32, i32
  }
}

</mosaic_0001>

<llo_original>
// kernel: tpu_custom_call.1
$region0: #{tpu_custom_call.1}
  #allocation0 [shape = 'u32[]', space=smem, size = 0x4, offset = 0x4, fixed_abs, tag = 'smem constant byte address 0x4 - core index']
  #allocation1 [shape = 'u32[72,128]{1,0:T(1,128)}', space=vmem, size = 0x9000, scoped, tag = 'internal scratch']
  %s0 = inlined_call_operand.vmem [shape: bf16[512,16], index: 0, kind: input, shape index: {}]
  %s1 = inlined_call_operand.vmem [shape: f32[16,8], index: 1, kind: input, shape index: {}]
  %s2 = inlined_call_operand.vmem [shape: f32[1,8], index: 2, kind: input, shape index: {}]
  %s3 = inlined_call_operand.vmem [shape: f32[8,8], index: 3, kind: input, shape index: {}]
  %s4 = inlined_call_operand.vmem [shape: f32[8,1], index: 4, kind: input, shape index: {}]
  %s5 = inlined_call_operand.vmem [shape: f32[8,8], index: 5, kind: input, shape index: {}]
  %s6 = inlined_call_operand.vmem [shape: f32[8,1], index: 6, kind: input, shape index: {}]
  %s7 = inlined_call_operand.vmem [shape: f32[8,8], index: 7, kind: input, shape index: {}]
  %s8 = inlined_call_operand.vmem [shape: f32[8,1], index: 8, kind: input, shape index: {}]
  %s9 = inlined_call_operand.vmem [shape: f32[4,8], index: 9, kind: input, shape index: {}]
  %s10 = inlined_call_operand.vmem [shape: f32[4,1], index: 10, kind: input, shape index: {}]
  %s11 = inlined_call_operand.hbm [shape: f32[4,512], index: 11, kind: output, shape index: {}]
  %s12 = sld [smem:[#allocation0]]
  $region77: #{tpu_custom_call.1} parent=0
    _
  %s14 = ssub.s32 1, %s12
  %s15 = scalar_select 0, %s14, %s12
  $region1: #{tpu_custom_call.1} parent=0
    #allocation2 [shape = 'u8[4096]{0}', space=vmem, size = 0x1000, scoped, tag = 'output window, operand 0']
    #allocation3 [shape = 's32[2]{0}', space=sflag, size = 0x8, scoped, tag = 'scoped memory for tpu_custom_call.1']
    %16 = vsyncpa [#allocation3], 0
    %s17 = scalar_lea.sflag [#allocation3], 1
    %18 = vsyncpa %s17, 0
    loop: start=0, step=1, limit=6
    $region2: #{tpu_custom_call.1} parent=1 // loop_pre_header
      _
    $region3: #{tpu_custom_call.1} parent=1 // loop_header
      %s20 = sphi 0, %s24
      %p21 = scmp.ge.s32.totalorder %s20, 6
      %s30 = sphi 0, %s32
      %s33 = sphi 0, %s30
      %s34 = sphi 0, %s33
      %s50 = sphi 0, %s34
      %s54 = sphi 0, %s54
      %s56 = sphi 0, %s54
      %s57 = sphi 0, %s56
      %s71 = sphi 0, %s57
      %s75 = sphi 0, %s75
      %s77 = sphi 0, %s75
      %s78 = sphi 0, %s77
      %s92 = sphi 0, %s78
      %s96 = sphi 0, %s96
      %s98 = sphi 0, %s96
      %s99 = sphi 0, %s98
      %s113 = sphi 0, %s99
      %s117 = sphi 0, %s117
      %s119 = sphi 0, %s117
      %s120 = sphi 0, %s119
      %s134 = sphi 0, %s120
      %s138 = sphi 0, %s138
      %s140 = sphi 0, %s138
      %s141 = sphi 0, %s140
      %s155 = sphi 0, %s141
      %s159 = sphi 0, %s159
      %s161 = sphi 0, %s159
      %s162 = sphi 0, %s161
      %s176 = sphi 0, %s162
      %s180 = sphi 0, %s180
      %s182 = sphi 0, %s180
      %s183 = sphi 0, %s182
      %s197 = sphi 0, %s183
      %s201 = sphi 0, %s201
      %s203 = sphi 0, %s201
      %s204 = sphi 0, %s203
      %s218 = sphi 0, %s204
      %s222 = sphi 0, %s222
      %s224 = sphi 0, %s222
      %s225 = sphi 0, %s224
      %s239 = sphi 0, %s225
      %s243 = sphi 0, %s243
      %s245 = sphi 0, %s243
      %s246 = sphi 0, %s245
      %s260 = sphi 0, %s246
      %s266 = sphi 0, %s268
      %s269 = sphi 0, %s266
      %s270 = sphi 0, %s269
      %s286 = sphi 0, %s270
    $region4: #{tpu_custom_call.1} parent=1 // loop_header_branch
      %23 = sbr.rel (%p21) target = $region8
    $region5: #{tpu_custom_call.1} parent=1 // loop_body
      %s25 = ssub.s32 %s20, 1
      %s26 = ssub.s32 %s20, 2
      %s27 = sadd.s32 %s20, 1
      %s28 = ssub.s32 %s20, %s27
      %p29 = scmp.eq.s32.totalorder %s28, 0
      %s31 = sadd.s32 %s30, 1
      %s32 = scalar_select %p29, %s30, %s31
      %p35 = pneg %p29
      %p36 = scmp.eq.s32.totalorder %s20, 3
      %p37 = por %p35, %p36
      %p38 = scmp.ne.s32.totalorder %s30, %s33
      %p39 = scmp.eq.s32.totalorder %s20, 0
      %p40 = por %p38, %p39
      %p41 = scmp.ne.s32.totalorder %s30, %s33
      %p42 = scmp.eq.s32.totalorder %s25, 3
      %p43 = por %p41, %p42
      %p44 = scmp.ne.s32.totalorder %s33, %s34
      %p45 = scmp.eq.s32.totalorder %s25, 0
      %p46 = por %p44, %p45
      %p47 = scmp.ne.s32.totalorder %s33, %s34
      %p48 = scmp.eq.s32.totalorder %s26, 3
      %p49 = por %p47, %p48
      %p51 = scmp.ne.s32.totalorder %s34, %s50
      %p52 = scmp.eq.s32.totalorder %s26, 0
      %p53 = por %p51, %p52
      %s55 = sadd.s32 %s54, 1
      %p58 = scmp.eq.s32.totalorder %s20, 3
      %p59 = scmp.ne.s32.totalorder %s54, %s56
      %p60 = scmp.eq.s32.totalorder %s20, 0
      %p61 = por %p59, %p60
      %p62 = scmp.ne.s32.totalorder %s54, %s56
      %p63 = scmp.eq.s32.totalorder %s25, 3
      %p64 = por %p62, %p63
      %p65 = scmp.ne.s32.totalorder %s56, %s57
      %p66 = scmp.eq.s32.totalorder %s25, 0
      %p67 = por %p65, %p66
      %p68 = scmp.ne.s32.totalorder %s56, %s57
      %p69 = scmp.eq.s32.totalorder %s26, 3
      %p70 = por %p68, %p69
      %p72 = scmp.ne.s32.totalorder %s57, %s71
      %p73 = scmp.eq.s32.totalorder %s26, 0
      %p74 = por %p72, %p73
      %s76 = sadd.s32 %s75, 1
      %p79 = scmp.eq.s32.totalorder %s20, 3
      %p80 = scmp.ne.s32.totalorder %s75, %s77
      %p81 = scmp.eq.s32.totalorder %s20, 0
      %p82 = por %p80, %p81
      %p83 = scmp.ne.s32.totalorder %s75, %s77
      %p84 = scmp.eq.s32.totalorder %s25, 3
      %p85 = por %p83, %p84
      %p86 = scmp.ne.s32.totalorder %s77, %s78
      %p87 = scmp.eq.s32.totalorder %s25, 0
      %p88 = por %p86, %p87
      %p89 = scmp.ne.s32.totalorder %s77, %s78
      %p90 = scmp.eq.s32.totalorder %s26, 3
      %p91 = por %p89, %p90
      %p93 = scmp.ne.s32.totalorder %s78, %s92
      %p94 = scmp.eq.s32.totalorder %s26, 0
      %p95 = por %p93, %p94
      %s97 = sadd.s32 %s96, 1
      %p100 = scmp.eq.s32.totalorder %s20, 3
      %p101 = scmp.ne.s32.totalorder %s96, %s98
      %p102 = scmp.eq.s32.totalorder %s20, 0
      %p103 = por %p101, %p102
      %p104 = scmp.ne.s32.totalorder %s96, %s98
      %p105 = scmp.eq.s32.totalorder %s25, 3
      %p106 = por %p104, %p105
      %p107 = scmp.ne.s32.totalorder %s98, %s99
      %p108 = scmp.eq.s32.totalorder %s25, 0
      %p109 = por %p107, %p108
      %p110 = scmp.ne.s32.totalorder %s98, %s99
      %p111 = scmp.eq.s32.totalorder %s26, 3
      %p112 = por %p110, %p111
      %p114 = scmp.ne.s32.totalorder %s99, %s113
      %p115 = scmp.eq.s32.totalorder %s26, 0
      %p116 = por %p114, %p115
      %s118 = sadd.s32 %s117, 1
      %p121 = scmp.eq.s32.totalorder %s20, 3
      %p122 = scmp.ne.s32.totalorder %s117, %s119
      %p123 = scmp.eq.s32.totalorder %s20, 0
      %p124 = por %p122, %p123
      %p125 = scmp.ne.s32.totalorder %s117, %s119
      %p126 = scmp.eq.s32.totalorder %s25, 3
      %p127 = por %p125, %p126
      %p128 = scmp.ne.s32.totalorder %s119, %s120
      %p129 = scmp.eq.s32.totalorder %s25, 0
      %p130 = por %p128, %p129
      %p131 = scmp.ne.s32.totalorder %s119, %s120
      %p132 = scmp.eq.s32.totalorder %s26, 3
      %p133 = por %p131, %p132
      %p135 = scmp.ne.s32.totalorder %s120, %s134
      %p136 = scmp.eq.s32.totalorder %s26, 0
      %p137 = por %p135, %p136
      %s139 = sadd.s32 %s138, 1
      %p142 = scmp.eq.s32.totalorder %s20, 3
      %p143 = scmp.ne.s32.totalorder %s138, %s140
      %p144 = scmp.eq.s32.totalorder %s20, 0
      %p145 = por %p143, %p144
      %p146 = scmp.ne.s32.totalorder %s138, %s140
      %p147 = scmp.eq.s32.totalorder %s25, 3
      %p148 = por %p146, %p147
      %p149 = scmp.ne.s32.totalorder %s140, %s141
      %p150 = scmp.eq.s32.totalorder %s25, 0
      %p151 = por %p149, %p150
      %p152 = scmp.ne.s32.totalorder %s140, %s141
      %p153 = scmp.eq.s32.totalorder %s26, 3
      %p154 = por %p152, %p153
      %p156 = scmp.ne.s32.totalorder %s141, %s155
      %p157 = scmp.eq.s32.totalorder %s26, 0
      %p158 = por %p156, %p157
      %s160 = sadd.s32 %s159, 1
      %p163 = scmp.eq.s32.totalorder %s20, 3
      %p164 = scmp.ne.s32.totalorder %s159, %s161
      %p165 = scmp.eq.s32.totalorder %s20, 0
      %p166 = por %p164, %p165
      %p167 = scmp.ne.s32.totalorder %s159, %s161
      %p168 = scmp.eq.s32.totalorder %s25, 3
      %p169 = por %p167, %p168
      %p170 = scmp.ne.s32.totalorder %s161, %s162
      %p171 = scmp.eq.s32.totalorder %s25, 0
      %p172 = por %p170, %p171
      %p173 = scmp.ne.s32.totalorder %s161, %s162
      %p174 = scmp.eq.s32.totalorder %s26, 3
      %p175 = por %p173, %p174
      %p177 = scmp.ne.s32.totalorder %s162, %s176
      %p178 = scmp.eq.s32.totalorder %s26, 0
      %p179 = por %p177, %p178
      %s181 = sadd.s32 %s180, 1
      %p184 = scmp.eq.s32.totalorder %s20, 3
      %p185 = scmp.ne.s32.totalorder %s180, %s182
      %p186 = scmp.eq.s32.totalorder %s20, 0
      %p187 = por %p185, %p186
      %p188 = scmp.ne.s32.totalorder %s180, %s182
      %p189 = scmp.eq.s32.totalorder %s25, 3
      %p190 = por %p188, %p189
      %p191 = scmp.ne.s32.totalorder %s182, %s183
      %p192 = scmp.eq.s32.totalorder %s25, 0
      %p193 = por %p191, %p192
      %p194 = scmp.ne.s32.totalorder %s182, %s183
      %p195 = scmp.eq.s32.totalorder %s26, 3
      %p196 = por %p194, %p195
      %p198 = scmp.ne.s32.totalorder %s183, %s197
      %p199 = scmp.eq.s32.totalorder %s26, 0
      %p200 = por %p198, %p199
      %s202 = sadd.s32 %s201, 1
      %p205 = scmp.eq.s32.totalorder %s20, 3
      %p206 = scmp.ne.s32.totalorder %s201, %s203
      %p207 = scmp.eq.s32.totalorder %s20, 0
      %p208 = por %p206, %p207
      %p209 = scmp.ne.s32.totalorder %s201, %s203
      %p210 = scmp.eq.s32.totalorder %s25, 3
      %p211 = por %p209, %p210
      %p212 = scmp.ne.s32.totalorder %s203, %s204
      %p213 = scmp.eq.s32.totalorder %s25, 0
      %p214 = por %p212, %p213
      %p215 = scmp.ne.s32.totalorder %s203, %s204
      %p216 = scmp.eq.s32.totalorder %s26, 3
      %p217 = por %p215, %p216
      %p219 = scmp.ne.s32.totalorder %s204, %s218
      %p220 = scmp.eq.s32.totalorder %s26, 0
      %p221 = por %p219, %p220
      %s223 = sadd.s32 %s222, 1
      %p226 = scmp.eq.s32.totalorder %s20, 3
      %p227 = scmp.ne.s32.totalorder %s222, %s224
      %p228 = scmp.eq.s32.totalorder %s20, 0
      %p229 = por %p227, %p228
      %p230 = scmp.ne.s32.totalorder %s222, %s224
      %p231 = scmp.eq.s32.totalorder %s25, 3
      %p232 = por %p230, %p231
      %p233 = scmp.ne.s32.totalorder %s224, %s225
      %p234 = scmp.eq.s32.totalorder %s25, 0
      %p235 = por %p233, %p234
      %p236 = scmp.ne.s32.totalorder %s224, %s225
      %p237 = scmp.eq.s32.totalorder %s26, 3
      %p238 = por %p236, %p237
      %p240 = scmp.ne.s32.totalorder %s225, %s239
      %p241 = scmp.eq.s32.totalorder %s26, 0
      %p242 = por %p240, %p241
      %s244 = sadd.s32 %s243, 1
      %p247 = scmp.eq.s32.totalorder %s20, 3
      %p248 = scmp.ne.s32.totalorder %s243, %s245
      %p249 = scmp.eq.s32.totalorder %s20, 0
      %p250 = por %p248, %p249
      %p251 = scmp.ne.s32.totalorder %s243, %s245
      %p252 = scmp.eq.s32.totalorder %s25, 3
      %p253 = por %p251, %p252
      %p254 = scmp.ne.s32.totalorder %s245, %s246
      %p255 = scmp.eq.s32.totalorder %s25, 0
      %p256 = por %p254, %p255
      %p257 = scmp.ne.s32.totalorder %s245, %s246
      %p258 = scmp.eq.s32.totalorder %s26, 3
      %p259 = por %p257, %p258
      %p261 = scmp.ne.s32.totalorder %s246, %s260
      %p262 = scmp.eq.s32.totalorder %s26, 0
      %p263 = por %p261, %p262
      %s264 = ssub.s32 %s20, %s27
      %p265 = scmp.eq.s32.totalorder %s264, 0
      %s267 = sadd.s32 %s266, 1
      %s268 = scalar_select %p265, %s266, %s267
      %p271 = pneg %p265
      %p272 = scmp.eq.s32.totalorder %s20, 3
      %p273 = por %p271, %p272
      %p274 = scmp.ne.s32.totalorder %s266, %s269
      %p275 = scmp.eq.s32.totalorder %s20, 0
      %p276 = por %p274, %p275
      %p277 = scmp.ne.s32.totalorder %s266, %s269
      %p278 = scmp.eq.s32.totalorder %s25, 3
      %p279 = por %p277, %p278
      %p280 = scmp.ne.s32.totalorder %s269, %s270
      %p281 = scmp.eq.s32.totalorder %s25, 0
      %p282 = por %p280, %p281
      %p283 = scmp.ne.s32.totalorder %s269, %s270
      %p284 = scmp.eq.s32.totalorder %s26, 3
      %p285 = por %p283, %p284
      %p287 = scmp.ne.s32.totalorder %s270, %s286
      %p288 = scmp.eq.s32.totalorder %s26, 0
      %p289 = por %p287, %p288
      %p290 = scmp.le.s32.totalorder 1, %s20
      %p291 = scmp.lt.s32.totalorder %s20, 5
      %p292 = pnand %p290, %p291
      %p293 = pneg %p292
      // Predicated region
      $region9: #{tpu_custom_call.1} parent=5 // pred_check
        _
      $region10: #{tpu_custom_call.1} parent=5 // pred_check_branch
        %295 = sbr.rel (%p292) target = $region12
      $region11: #{tpu_custom_call.1} parent=5 // pred_region
        %s296 = ssub.s32 %s20, 1
        // Predicated region
        $region13: #{tpu_custom_call.1} parent=11 // pred_check
          %p297 = pneg %p67
        $region14: #{tpu_custom_call.1} parent=11 // pred_check_branch
          %299 = sbr.rel (%p297) target = $region16
        $region15: #{tpu_custom_call.1} parent=11 // pred_region
          _
        $region16: #{tpu_custom_call.1} parent=11 // pred_fallthru
          _
        // Predicated region
        $region17: #{tpu_custom_call.1} parent=11 // pred_check
          %p300 = pneg %p88
        $region18: #{tpu_custom_call.1} parent=11 // pred_check_branch
          %302 = sbr.rel (%p300) target = $region20
        $region19: #{tpu_custom_call.1} parent=11 // pred_region
          _
        $region20: #{tpu_custom_call.1} parent=11 // pred_fallthru
          _
        // Predicated region
        $region21: #{tpu_custom_call.1} parent=11 // pred_check
          %p303 = pneg %p109
        $region22: #{tpu_custom_call.1} parent=11 // pred_check_branch
          %305 = sbr.rel (%p303) target = $region24
        $region23: #{tpu_custom_call.1} parent=11 // pred_region
          _
        $region24: #{tpu_custom_call.1} parent=11 // pred_fallthru
          _
        // Predicated region
        $region25: #{tpu_custom_call.1} parent=11 // pred_check
          %p306 = pneg %p130
        $region26: #{tpu_custom_call.1} parent=11 // pred_check_branch
          %308 = sbr.rel (%p306) target = $region28
        $region27: #{tpu_custom_call.1} parent=11 // pred_region
          _
        $region28: #{tpu_custom_call.1} parent=11 // pred_fallthru
          _
        // Predicated region
        $region29: #{tpu_custom_call.1} parent=11 // pred_check
          %p309 = pneg %p151
        $region30: #{tpu_custom_call.1} parent=11 // pred_check_branch
          %311 = sbr.rel (%p309) target = $region32
        $region31: #{tpu_custom_call.1} parent=11 // pred_region
          _
        $region32: #{tpu_custom_call.1} parent=11 // pred_fallthru
          _
        // Predicated region
        $region33: #{tpu_custom_call.1} parent=11 // pred_check
          %p312 = pneg %p172
        $region34: #{tpu_custom_call.1} parent=11 // pred_check_branch
          %314 = sbr.rel (%p312) target = $region36
        $region35: #{tpu_custom_call.1} parent=11 // pred_region
          _
        $region36: #{tpu_custom_call.1} parent=11 // pred_fallthru
          _
        // Predicated region
        $region37: #{tpu_custom_call.1} parent=11 // pred_check
          %p315 = pneg %p193
        $region38: #{tpu_custom_call.1} parent=11 // pred_check_branch
          %317 = sbr.rel (%p315) target = $region40
        $region39: #{tpu_custom_call.1} parent=11 // pred_region
          _
        $region40: #{tpu_custom_call.1} parent=11 // pred_fallthru
          _
        // Predicated region
        $region41: #{tpu_custom_call.1} parent=11 // pred_check
          %p318 = pneg %p214
        $region42: #{tpu_custom_call.1} parent=11 // pred_check_branch
          %320 = sbr.rel (%p318) target = $region44
        $region43: #{tpu_custom_call.1} parent=11 // pred_region
          _
        $region44: #{tpu_custom_call.1} parent=11 // pred_fallthru
          _
        // Predicated region
        $region45: #{tpu_custom_call.1} parent=11 // pred_check
          %p321 = pneg %p235
        $region46: #{tpu_custom_call.1} parent=11 // pred_check_branch
          %323 = sbr.rel (%p321) target = $region48
        $region47: #{tpu_custom_call.1} parent=11 // pred_region
          _
        $region48: #{tpu_custom_call.1} parent=11 // pred_fallthru
          _
        // Predicated region
        $region49: #{tpu_custom_call.1} parent=11 // pred_check
          %p324 = pneg %p256
        $region50: #{tpu_custom_call.1} parent=11 // pred_check_branch
          %326 = sbr.rel (%p324) target = $region52
        $region51: #{tpu_custom_call.1} parent=11 // pred_region
          _
        $region52: #{tpu_custom_call.1} parent=11 // pred_fallthru
          _
      $region12: #{tpu_custom_call.1} parent=5 // pred_fallthru
        _
      %p327 = scmp.lt.s32.totalorder %s20, 4
      // Predicated region
      $region53: #{tpu_custom_call.1} parent=5 // pred_check
        %p328 = pneg %p327
      $region54: #{tpu_custom_call.1} parent=5 // pred_check_branch
        %330 = sbr.rel (%p328) target = $region56
      $region55: #{tpu_custom_call.1} parent=5 // pred_region
        // Predicated region
        $region57: #{tpu_custom_call.1} parent=55 // pred_check
          %p331 = pneg %p40
        $region58: #{tpu_custom_call.1} parent=55 // pred_check_branch
          %333 = sbr.rel (%p331) target = $region60
        $region59: #{tpu_custom_call.1} parent=55 // pred_region
          %s334 = smul.u32 16, %s20
          %p335 = scmp.lt.s32.totalorder %s334, 63
          %s336 = scalar_select %p335, %s334, 63
          %s337 = smul.addr %s336, 4
          %s338 = scalar_lea.vmem %s0, %s337
          %s339 = smul.u32 16, %s20
        $region60: #{tpu_custom_call.1} parent=55 // pred_fallthru
          _
      $region56: #{tpu_custom_call.1} parent=5 // pred_fallthru
        _
      %p340 = scmp.le.s32.totalorder 1, %s20
      %p341 = scmp.lt.s32.totalorder %s20, 5
      %p342 = pnand %p340, %p341
      %p343 = pneg %p342
      // Predicated region
      $region61: #{tpu_custom_call.1} parent=5 // pred_check
        _
      $region62: #{tpu_custom_call.1} parent=5 // pred_check_branch
        %345 = sbr.rel (%p342) target = $region64
      $region63: #{tpu_custom_call.1} parent=5 // pred_region
        %s346 = ssub.s32 %s20, 1
        %s347 = smul.u32 16, %s25
        %p348 = scmp.lt.s32.totalorder %s347, 63
        %s349 = scalar_select %p348, %s347, 63
        %s350 = smul.addr %s349, 4
        %s351 = scalar_lea.vmem %s0, %s350
        %p352 = pneg %p46
        %p353 = pneg %p43
        %p354 = pneg %p67
        %p355 = pneg %p64
        %p356 = pneg %p88
        %p357 = pneg %p85
        %p358 = pneg %p109
        %p359 = pneg %p106
        %p360 = pneg %p130
        %p361 = pneg %p127
        %p362 = pneg %p151
        %p363 = pneg %p148
        %p364 = pneg %p172
        %p365 = pneg %p169
        %p366 = pneg %p193
        %p367 = pneg %p190
        %p368 = pneg %p214
        %p369 = pneg %p211
        %p370 = pneg %p235
        %p371 = pneg %p232
        %p372 = pneg %p256
        %p373 = pneg %p253
        %p374 = pneg %p282
        %p375 = pneg %p279
        %s376 = sand.u32 %s269, 1
        %s377 = scalar_lea.sflag [#allocation3], %s376
        %s378 = sand.u32 %s269, 1
        %s379 = smul.addr %s378, 4
        %s380 = scalar_lea.vmem [#allocation2], %s379
        %s381 = smul.u32 16, %s25
        %p382 = scmp.lt.s32.totalorder %s381, 63
        %s383 = scalar_select %p382, %s381, 63
        %s384 = smul.addr %s383, 4
        %s385 = scalar_lea.vmem %s0, %s384
        %s386 = smul.u32 16, %s25
        %v387 = vld [vmem:[%s385] sm:$0xf]
        %v388 = vld [vmem:[%s385 + $0x4] sm:$0xf]
        %v389 = vld [vmem:[%s385 + $0x8] sm:$0xf]
        %v390 = vld [vmem:[%s385 + $0xc] sm:$0xf]
        %v391 = vld [vmem:[%s385 + $0x10] sm:$0xf]
        %v392 = vld [vmem:[%s385 + $0x14] sm:$0xf]
        %v393 = vld [vmem:[%s385 + $0x18] sm:$0xf]
        %v394 = vld [vmem:[%s385 + $0x1c] sm:$0xf]
        %v395 = vld [vmem:[%s385 + $0x20] sm:$0xf]
        %v396 = vld [vmem:[%s385 + $0x24] sm:$0xf]
        %v397 = vld [vmem:[%s385 + $0x28] sm:$0xf]
        %v398 = vld [vmem:[%s385 + $0x2c] sm:$0xf]
        %v399 = vld [vmem:[%s385 + $0x30] sm:$0xf]
        %v400 = vld [vmem:[%s385 + $0x34] sm:$0xf]
        %v401 = vld [vmem:[%s385 + $0x38] sm:$0xf]
        %v402 = vld [vmem:[%s385 + $0x3c] sm:$0xf]
        %v403 = vunpack.c.l.bf16 %v387
        %v404 = vunpack.c.l.bf16 %v388
        %v405 = vunpack.c.l.bf16 %v389
        %v406 = vunpack.c.l.bf16 %v390
        %v407 = vunpack.c.l.bf16 %v391
        %v408 = vunpack.c.l.bf16 %v392
        %v409 = vunpack.c.l.bf16 %v393
        %v410 = vunpack.c.l.bf16 %v394
        %v411 = vunpack.c.l.bf16 %v395
        %v412 = vunpack.c.l.bf16 %v396
        %v413 = vunpack.c.l.bf16 %v397
        %v414 = vunpack.c.l.bf16 %v398
        %v415 = vunpack.c.l.bf16 %v399
        %v416 = vunpack.c.l.bf16 %v400
        %v417 = vunpack.c.l.bf16 %v401
        %v418 = vunpack.c.l.bf16 %v402
        %v419 = vld [vmem:[%s1] sm:$0xff]
        %v420 = vld [vmem:[%s1 + $0x8] sm:$0xff]
        %v421 = vld [vmem:[%s2] sm:$0x1]
        %v423 = vperm.slane %v421, 0
        %vm425 = vcmask 130048
        %v427 = vsel %vm425, %v403, 0
        %v430 = vsel %vm425, %v404, 0
        %v433 = vsel %vm425, %v405, 0
        %v436 = vsel %vm425, %v406, 0
        %v439 = vsel %vm425, %v407, 0
        %v442 = vsel %vm425, %v408, 0
        %v445 = vsel %vm425, %v409, 0
        %v448 = vsel %vm425, %v410, 0
        %v451 = vsel %vm425, %v411, 0
        %v454 = vsel %vm425, %v412, 0
        %v457 = vsel %vm425, %v413, 0
        %v460 = vsel %vm425, %v414, 0
        %v463 = vsel %vm425, %v415, 0
        %v466 = vsel %vm425, %v416, 0
        %v469 = vsel %vm425, %v417, 0
        %v472 = vsel %vm425, %v418, 0
        %474 = vmatpush.msra.mxu0 0.0
        %475 = vmatpush.msra.mxu0 0.0
        %476 = vmatpush.msra.mxu0 0.0
        %477 = vmatpush.msra.mxu0 0.0
        %478 = vmatpush.msra.mxu0 0.0
        %479 = vmatpush.msra.mxu0 0.0
        %480 = vmatpush.msra.mxu0 0.0
        %481 = vmatpush.msra.mxu0 0.0
        %482 = vmatpush.msra.mxu0 0.0
        %483 = vmatpush.msra.mxu0 0.0
        %484 = vmatpush.msra.mxu0 0.0
        %485 = vmatpush.msra.mxu0 0.0
        %486 = vmatpush.msra.mxu0 0.0
        %487 = vmatpush.msra.mxu0 0.0
        %488 = vmatpush.msra.mxu0 %v420
        %489 = vmatpush.msra.mxu0 %v419
        %490 = vmatmul.f32.gmra.mxu0 %v427
        %v491 = vpop.f32.mrf.mxu0
        %v492 = vadd.f32 %v423, %v491
        %493 = vmatmul.f32.gmra.mxu0 %v430
        %v494 = vpop.f32.mrf.mxu0
        %v495 = vadd.f32 %v423, %v494
        %496 = vmatmul.f32.gmra.mxu0 %v433
        %v497 = vpop.f32.mrf.mxu0
        %v498 = vadd.f32 %v423, %v497
        %499 = vmatmul.f32.gmra.mxu0 %v436
        %v500 = vpop.f32.mrf.mxu0
        %v501 = vadd.f32 %v423, %v500
        %502 = vmatmul.f32.gmra.mxu0 %v439
        %v503 = vpop.f32.mrf.mxu0
        %v504 = vadd.f32 %v423, %v503
        %505 = vmatmul.f32.gmra.mxu0 %v442
        %v506 = vpop.f32.mrf.mxu0
        %v507 = vadd.f32 %v423, %v506
        %508 = vmatmul.f32.gmra.mxu0 %v445
        %v509 = vpop.f32.mrf.mxu0
        %v510 = vadd.f32 %v423, %v509
        %511 = vmatmul.f32.gmra.mxu0 %v448
        %v512 = vpop.f32.mrf.mxu0
        %v513 = vadd.f32 %v423, %v512
        %514 = vmatmul.f32.gmra.mxu0 %v451
        %v515 = vpop.f32.mrf.mxu0
        %v516 = vadd.f32 %v423, %v515
        %517 = vmatmul.f32.gmra.mxu0 %v454
        %v518 = vpop.f32.mrf.mxu0
        %v519 = vadd.f32 %v423, %v518
        %520 = vmatmul.f32.gmra.mxu0 %v457
        %v521 = vpop.f32.mrf.mxu0
        %v522 = vadd.f32 %v423, %v521
        %523 = vmatmul.f32.gmra.mxu0 %v460
        %v524 = vpop.f32.mrf.mxu0
        %v525 = vadd.f32 %v423, %v524
        %526 = vmatmul.f32.gmra.mxu0 %v463
        %v527 = vpop.f32.mrf.mxu0
        %v528 = vadd.f32 %v423, %v527
        %529 = vmatmul.f32.gmra.mxu0 %v466
        %v530 = vpop.f32.mrf.mxu0
        %v531 = vadd.f32 %v423, %v530
        %532 = vmatmul.f32.gmra.mxu0 %v469
        %v533 = vpop.f32.mrf.mxu0
        %v534 = vadd.f32 %v423, %v533
        %535 = vmatmul.f32.gmra.mxu0 %v472
        %v536 = vpop.f32.mrf.mxu0
        %v537 = vadd.f32 %v423, %v536
        %538 = vdwg.mxu0
        %v539 = vmax.f32 %v492, 0.0
        %v540 = vmax.f32 %v495, 0.0
        %v541 = vmax.f32 %v498, 0.0
        %v542 = vmax.f32 %v501, 0.0
        %v543 = vmax.f32 %v504, 0.0
        %v544 = vmax.f32 %v507, 0.0
        %v545 = vmax.f32 %v510, 0.0
        %v546 = vmax.f32 %v513, 0.0
        %v547 = vmax.f32 %v516, 0.0
        %v548 = vmax.f32 %v519, 0.0
        %v549 = vmax.f32 %v522, 0.0
        %v550 = vmax.f32 %v525, 0.0
        %v551 = vmax.f32 %v528, 0.0
        %v552 = vmax.f32 %v531, 0.0
        %v553 = vmax.f32 %v534, 0.0
        %v554 = vmax.f32 %v537, 0.0
        %v555 = vld [vmem:[%s3] sm:$0xff]
        %v556 = vld [vmem:[%s4] sm:$0xff]
        %558 = vset.pattern.permute.xlu0 0
        %559 = vperm.xlu0 %558, %v556
        %v560 = vpop.permute.xlu0 %559
        %vm562 = vcmask 64512
        %v564 = vsel %vm562, %v555, 0
        %v567 = vsel %vm562, %v539, 0
        %v570 = vsel %vm562, %v540, 0
        %v573 = vsel %vm562, %v541, 0
        %v576 = vsel %vm562, %v542, 0
        %v579 = vsel %vm562, %v543, 0
        %v582 = vsel %vm562, %v544, 0
        %v585 = vsel %vm562, %v545, 0
        %v588 = vsel %vm562, %v546, 0
        %v591 = vsel %vm562, %v547, 0
        %v594 = vsel %vm562, %v548, 0
        %v597 = vsel %vm562, %v549, 0
        %v600 = vsel %vm562, %v550, 0
        %v603 = vsel %vm562, %v551, 0
        %v606 = vsel %vm562, %v552, 0
        %v609 = vsel %vm562, %v553, 0
        %v612 = vsel %vm562, %v554, 0
        %614 = vmatpush.xpose.msra.mxu0 %v612
        %615 = vmatpush.xpose.msra.mxu0 %v609
        %616 = vmatpush.xpose.msra.mxu0 %v606
        %617 = vmatpush.xpose.msra.mxu0 %v603
        %618 = vmatpush.xpose.msra.mxu0 %v600
        %619 = vmatpush.xpose.msra.mxu0 %v597
        %620 = vmatpush.xpose.msra.mxu0 %v594
        %621 = vmatpush.xpose.msra.mxu0 %v591
        %622 = vmatpush.xpose.msra.mxu0 %v588
        %623 = vmatpush.xpose.msra.mxu0 %v585
        %624 = vmatpush.xpose.msra.mxu0 %v582
        %625 = vmatpush.xpose.msra.mxu0 %v579
        %626 = vmatpush.xpose.msra.mxu0 %v576
        %627 = vmatpush.xpose.msra.mxu0 %v573
        %628 = vmatpush.xpose.msra.mxu0 %v570
        %629 = vmatpush.xpose.msra.mxu0 %v567
        %630 = vmatmul.f32.gmra.mxu0 %v564
        %v631 = vpop.f32.mrf.mxu0
        %v632 = vadd.f32 %v560, %v631
        %633 = vdwg.mxu0
        %v634 = vmax.f32 %v632, 0.0
        %v635 = vld [vmem:[%s5] sm:$0xff]
        %v636 = vld [vmem:[%s6] sm:$0xff]
        %638 = vset.pattern.permute.xlu0 0
        %639 = vperm.xlu0 %638, %v636
        %v640 = vpop.permute.xlu0 %639
        %v643 = vsel %vm562, %v635, 0
        %645 = vmatpush.msra.mxu0 0.0
        %646 = vmatpush.msra.mxu0 0.0
        %647 = vmatpush.msra.mxu0 0.0
        %648 = vmatpush.msra.mxu0 0.0
        %649 = vmatpush.msra.mxu0 0.0
        %650 = vmatpush.msra.mxu0 0.0
        %651 = vmatpush.msra.mxu0 0.0
        %652 = vmatpush.msra.mxu0 0.0
        %653 = vmatpush.msra.mxu0 0.0
        %654 = vmatpush.msra.mxu0 0.0
        %655 = vmatpush.msra.mxu0 0.0
        %656 = vmatpush.msra.mxu0 0.0
        %657 = vmatpush.msra.mxu0 0.0
        %658 = vmatpush.msra.mxu0 0.0
        %659 = vmatpush.msra.mxu0 0.0
        %660 = vmatpush.msra.mxu0 %v634
        %661 = vmatmul.f32.gmra.mxu0 %v643
        %v662 = vpop.f32.mrf.mxu0
        %v663 = vadd.f32 %v640, %v662
        %664 = vdwg.mxu0
        %v665 = vmax.f32 %v663, 0.0
        %v666 = vld [vmem:[%s7] sm:$0xff]
        %v667 = vld [vmem:[%s8] sm:$0xff]
        %669 = vset.pattern.permute.xlu0 0
        %670 = vperm.xlu0 %669, %v667
        %v671 = vpop.permute.xlu0 %670
        %v674 = vsel %vm562, %v666, 0
        %676 = vmatpush.msra.mxu0 0.0
        %677 = vmatpush.msra.mxu0 0.0
        %678 = vmatpush.msra.mxu0 0.0
        %679 = vmatpush.msra.mxu0 0.0
        %680 = vmatpush.msra.mxu0 0.0
        %681 = vmatpush.msra.mxu0 0.0
        %682 = vmatpush.msra.mxu0 0.0
        %683 = vmatpush.msra.mxu0 0.0
        %684 = vmatpush.msra.mxu0 0.0
        %685 = vmatpush.msra.mxu0 0.0
        %686 = vmatpush.msra.mxu0 0.0
        %687 = vmatpush.msra.mxu0 0.0
        %688 = vmatpush.msra.mxu0 0.0
        %689 = vmatpush.msra.mxu0 0.0
        %690 = vmatpush.msra.mxu0 0.0
        %691 = vmatpush.msra.mxu0 %v665
        %692 = vmatmul.f32.gmra.mxu0 %v674
        %v693 = vpop.f32.mrf.mxu0
        %v694 = vadd.f32 %v671, %v693
        %695 = vdwg.mxu0
        %v696 = vmax.f32 %v694, 0.0
        %v697 = vld [vmem:[%s9] sm:$0xf]
        %v698 = vld [vmem:[%s10] sm:$0xf]
        %700 = vset.pattern.permute.xlu0 0
        %701 = vperm.xlu0 %700, %v698
        %v702 = vpop.permute.xlu0 %701
        %v705 = vsel %vm562, %v697, 0
        %707 = vmatpush.msra.mxu0 0.0
        %708 = vmatpush.msra.mxu0 0.0
        %709 = vmatpush.msra.mxu0 0.0
        %710 = vmatpush.msra.mxu0 0.0
        %711 = vmatpush.msra.mxu0 0.0
        %712 = vmatpush.msra.mxu0 0.0
        %713 = vmatpush.msra.mxu0 0.0
        %714 = vmatpush.msra.mxu0 0.0
        %715 = vmatpush.msra.mxu0 0.0
        %716 = vmatpush.msra.mxu0 0.0
        %717 = vmatpush.msra.mxu0 0.0
        %718 = vmatpush.msra.mxu0 0.0
        %719 = vmatpush.msra.mxu0 0.0
        %720 = vmatpush.msra.mxu0 0.0
        %721 = vmatpush.msra.mxu0 0.0
        %722 = vmatpush.msra.mxu0 %v696
        %723 = vmatmul.f32.gmra.mxu0 %v705
        %v724 = vpop.f32.mrf.mxu0
        %v725 = vadd.f32 %v702, %v724
        %726 = vdwg.mxu0
        %v727 = vmax.f32 %v725, 0.0
        %728 = vst [vmem:[%s380] sm:$0xf] %v727
        %s729 = sand.u32 %s269, 1
        %s730 = scalar_lea.sflag [#allocation3], %s729
        %s731 = sand.u32 %s269, 1
        %s732 = smul.addr %s731, 4
        %s733 = scalar_lea.vmem [#allocation2], %s732
        // Predicated region
        $region65: #{tpu_custom_call.1} parent=63 // pred_check
          %p734 = pneg %p279
        $region66: #{tpu_custom_call.1} parent=63 // pred_check_branch
          %736 = sbr.rel (%p734) target = $region68
        $region67: #{tpu_custom_call.1} parent=63 // pred_region
          %738 = vsyncadd %s730, 0
          %s739 = smul.addr %s25, 4
          %s740 = scalar_lea.hbm %s11, %s739
          %s742 = sshll.u32 %s733, 4
          %s743 = int_to_ptr.vmem [resolvable:$true] %s742
          %s744 = sshll.u32 %s740, 4
          %s745 = int_to_ptr.hbm [resolvable:$true] %s744
          %747 = dma.vmem_to_hbm [thread:$0]  %s743, 64, %s745, %s730
        $region68: #{tpu_custom_call.1} parent=63 // pred_fallthru
          _
      $region64: #{tpu_custom_call.1} parent=5 // pred_fallthru
        _
      %p748 = scmp.le.s32.totalorder 2, %s20
      // Predicated region
      $region69: #{tpu_custom_call.1} parent=5 // pred_check
        %p749 = pneg %p748
      $region70: #{tpu_custom_call.1} parent=5 // pred_check_branch
        %751 = sbr.rel (%p749) target = $region72
      $region71: #{tpu_custom_call.1} parent=5 // pred_region
        %s752 = ssub.s32 %s20, 2
        // Predicated region
        $region73: #{tpu_custom_call.1} parent=71 // pred_check
          %p753 = pneg %p285
        $region74: #{tpu_custom_call.1} parent=71 // pred_check_branch
          %755 = sbr.rel (%p753) target = $region76
        $region75: #{tpu_custom_call.1} parent=71 // pred_region
          %s756 = sand.u32 %s270, 1
          %s757 = scalar_lea.sflag [#allocation3], %s756
          %s758 = sand.u32 %s270, 1
          %s759 = smul.addr %s758, 4
          %s760 = scalar_lea.vmem [#allocation2], %s759
          %762 = dma.done %s757, 64
        $region76: #{tpu_custom_call.1} parent=71 // pred_fallthru
          _
      $region72: #{tpu_custom_call.1} parent=5 // pred_fallthru
        _
    $region6: #{tpu_custom_call.1} parent=1 // loop_footer
      %s24 = sadd.s32 1, %s20
    $region7: #{tpu_custom_call.1} parent=1 // loop_footer_branch
      %19 = sbr.rel target = $region3
    $region8: #{tpu_custom_call.1} parent=1 // loop_exit
      _
    %763 = vsyncpa [#allocation3], 1
    %s764 = scalar_lea.sflag [#allocation3], 1
    %765 = vsyncpa %s764, 1

</llo_original>
